<compile_context>
chip_gen: v7x
topology: tpu7x:2x2x1
jax: 0.10.0
libtpu: 0.0.40
codegen_flags: <defaults>
</compile_context>

<pallas_src>
import functools

import jax
import jax.numpy as jnp
from jax.experimental import pallas as pl
from jax.experimental.pallas import tpu as pltpu


_MAX_CHUNKS = 8                         # concurrent DMA descriptors per call
_TARGET_CHUNK_BYTES = 4 * 1024 * 1024   # don't bother splitting below ~4 MiB


def _dma_copy_kernel(x_hbm, o_hbm, sems, *, chunks):
    """Direct HBM->HBM copy: one async DMA per contiguous row chunk."""
    copies = []
    for k, (start, size) in enumerate(chunks):
        cp = pltpu.make_async_copy(
            x_hbm.at[pl.ds(start, size)],
            o_hbm.at[pl.ds(start, size)],
            sems.at[k],
        )
        cp.start()
        copies.append(cp)
    for cp in copies:
        cp.wait()


def _row_chunks(rows, num_chunks, align=8):
    """Split [0, rows) into <= num_chunks contiguous (start, size) pieces.

    Chunk starts/sizes stay multiples of `align` (sublane-dense) whenever
    possible; the final chunk absorbs any remainder.
    """
    chunks = []
    start = 0
    for k in range(num_chunks):
        remaining_rows = rows - start
        if remaining_rows <= 0:
            break
        remaining_chunks = num_chunks - k
        size = -(-remaining_rows // remaining_chunks)          # ceil div
        if align > 1 and remaining_rows > size:
            size = min(remaining_rows, -(-size // align) * align)
        chunks.append((start, size))
        start += size
    return tuple(chunks)


def _direct_copy_2d(x2d):
    """Copy a 2D array with raw HBM->HBM DMAs (no VMEM staging, no grid)."""
    rows, cols = x2d.shape
    total_bytes = rows * cols * jnp.dtype(x2d.dtype).itemsize
    num_chunks = max(1, min(_MAX_CHUNKS,
                            pl.cdiv(total_bytes, _TARGET_CHUNK_BYTES),
                            rows))
    chunks = _row_chunks(rows, num_chunks)

    return pl.pallas_call(
        functools.partial(_dma_copy_kernel, chunks=chunks),
        out_shape=jax.ShapeDtypeStruct((rows, cols), x2d.dtype),
        in_specs=[pl.BlockSpec(memory_space=pl.ANY)],
        out_specs=pl.BlockSpec(memory_space=pl.ANY),
        scratch_shapes=[pltpu.SemaphoreType.DMA((len(chunks),))],
    )(x2d)


def _choose_slab_cols(total, itemsize):
    """Pick a lane-dense column count (multiple of 128) dividing `total`.

    Prefers factorizations with sublane-dense rows (rows % 8 == 0) and enough
    rows to split the copy across several DMA chunks; among equals, wider is
    better.  Returns None if `total` has no multiple-of-128 divisor <= 8192.
    """
    want_chunks = max(1, min(_MAX_CHUNKS,
                             pl.cdiv(total * itemsize, _TARGET_CHUNK_BYTES)))
    best = None
    for cols in range(128, min(total, 8192) + 1, 128):
        if total % cols:
            continue
        rows = total // cols
        score = (rows % 8 == 0, rows >= 8 * want_chunks, cols)
        if best is None or score > best[0]:
            best = (score, cols)
    return None if best is None else best[1]


def flatten_pallas(x):
    """Equivalent of PyTorch: x.reshape((x.shape[0], -1))."""
    bs = x.shape[0]
    flat = 1
    for d in x.shape[1:]:
        flat *= d
    total = bs * flat
    if total == 0:
        return jnp.reshape(x, (bs, flat))

    itemsize = jnp.dtype(x.dtype).itemsize
    cols = _choose_slab_cols(total, itemsize)
    if cols is not None:
        rows = total // cols
        # Lane/sublane-dense slab view of the contiguous data; the (bs, flat)
        # result is recovered with a metadata-only reshape of the copy.
        out2d = _direct_copy_2d(x.reshape(rows, cols))
        return out2d.reshape(bs, flat)

    # Element count has no multiple-of-128 divisor: DMA the (bs, flat) view
    # directly.  Still a few large contiguous HBM->HBM copies (correct for any
    # shape; only slightly less lane-dense).
    return _direct_copy_2d(x.reshape(bs, flat))


if __name__ == "__main__":
    key = jax.random.PRNGKey(0)

    # Small NCHW input consistent with the module's usage: (B, C, H, W).
    B, C, H, W = 2, 4, 16, 16
    x = jax.random.normal(key, (B, C, H, W), dtype=jnp.float32)

    y = jax.block_until_ready(flatten_pallas(x))
    y_ref = x.reshape(B, -1)
    assert y.shape == (B, C * H * W), y.shape
    assert y.dtype == x.dtype
    assert bool(jnp.array_equal(y, y_ref))

    # Exercise the non-128-divisible fallback path once as well.
    x_odd = jax.random.normal(jax.random.PRNGKey(1), (2, 3, 5, 7), dtype=jnp.float32)
    y_odd = jax.block_until_ready(flatten_pallas(x_odd))
    assert y_odd.shape == (2, 3 * 5 * 7)
    assert bool(jnp.array_equal(y_odd, x_odd.reshape(2, -1)))

    print("KERNEL_OK")
</pallas_src>

<mosaic_0001>
module attributes {stable_mosaic.version = 11 : i64} {
  func.func @_dma_copy_kernel(%arg0: memref<8x256xf32, #tpu.memory_space<any>>, %arg1: memref<8x256xf32, #tpu.memory_space<any>>, %arg2: memref<1x!tpu.dma_semaphore, #tpu.memory_space<semaphore_mem>>) attributes {dimension_semantics = [], scalar_prefetch = 0 : i64, scratch_operands = 1 : i64, tpu.core_type = #tpu.core_type<tc>} {
    %c0_i32 = arith.constant 0 : i32
    %c0_i32_0 = arith.constant 0 : i32
    %c0_i32_1 = arith.constant 0 : i32
    %0 = tpu.memref_slice %arg0[%c0_i32_0, %c0_i32_1] : memref<8x256xf32, #tpu.memory_space<any>> -> memref<8x256xf32, #tpu.memory_space<any>>
    %c0_i32_2 = arith.constant 0 : i32
    %c0_i32_3 = arith.constant 0 : i32
    %1 = tpu.memref_slice %arg1[%c0_i32_2, %c0_i32_3] : memref<8x256xf32, #tpu.memory_space<any>> -> memref<8x256xf32, #tpu.memory_space<any>>
    %2 = tpu.memref_slice %arg2[%c0_i32] : memref<1x!tpu.dma_semaphore, #tpu.memory_space<semaphore_mem>> -> memref<1x!tpu.dma_semaphore, #tpu.memory_space<semaphore_mem>>
    %3 = tpu.memref_squeeze %2 : memref<1x!tpu.dma_semaphore, #tpu.memory_space<semaphore_mem>> -> memref<!tpu.dma_semaphore, #tpu.memory_space<semaphore_mem>>
    tpu.enqueue_dma source(%0 : memref<8x256xf32, #tpu.memory_space<any>>) target(%1 : memref<8x256xf32, #tpu.memory_space<any>>) target_semaphore(%3 : memref<!tpu.dma_semaphore, #tpu.memory_space<semaphore_mem>>)
    %c0_i32_4 = arith.constant 0 : i32
    %c0_i32_5 = arith.constant 0 : i32
    %c0_i32_6 = arith.constant 0 : i32
    %4 = tpu.memref_slice %arg0[%c0_i32_5, %c0_i32_6] : memref<8x256xf32, #tpu.memory_space<any>> -> memref<8x256xf32, #tpu.memory_space<any>>
    %c0_i32_7 = arith.constant 0 : i32
    %c0_i32_8 = arith.constant 0 : i32
    %5 = tpu.memref_slice %arg1[%c0_i32_7, %c0_i32_8] : memref<8x256xf32, #tpu.memory_space<any>> -> memref<8x256xf32, #tpu.memory_space<any>>
    %6 = tpu.memref_slice %arg2[%c0_i32_4] : memref<1x!tpu.dma_semaphore, #tpu.memory_space<semaphore_mem>> -> memref<1x!tpu.dma_semaphore, #tpu.memory_space<semaphore_mem>>
    %7 = tpu.memref_squeeze %6 : memref<1x!tpu.dma_semaphore, #tpu.memory_space<semaphore_mem>> -> memref<!tpu.dma_semaphore, #tpu.memory_space<semaphore_mem>>
    tpu.wait_dma2 semaphore(%7 : memref<!tpu.dma_semaphore, #tpu.memory_space<semaphore_mem>>) src(%4 : memref<8x256xf32, #tpu.memory_space<any>>) dst(%5 : memref<8x256xf32, #tpu.memory_space<any>>)
    return
  }
}

</mosaic_0001>

<llo_original>
// kernel: tpu_custom_call.1
$region0: #{tpu_custom_call.1}
  #allocation0 [shape = 'u32[]', space=smem, size = 0x4, offset = 0x4, fixed_abs, tag = 'smem constant byte address 0x4 - core index']
  #allocation1 [shape = 'u32[144,128]{1,0:T(1,128)}', space=vmem, size = 0x12000, scoped, tag = 'internal scratch']
  #allocation2 [shape = 's32[1]{0}', space=sflag, size = 0x4, scoped, tag = 'scratch operand']
  #allocation3 [shape = 's32[]', space=sflag, size = 0x4, offset = 0, fixed_abs, tag = 'sflag constant byte address 0x0 - dummy sync flag']
  #allocation4 [shape = 'u32[0]{0}', space=smem, size = 0, offset = 0, fixed_abs, tag = 'smem constant byte address 0x0 - null']
  %s0 = inlined_call_operand.hbm [shape: f32[8,256], index: 0, kind: input, shape index: {}]
  %s1 = inlined_call_operand.hbm [shape: f32[8,256], index: 1, kind: output, shape index: {}]
  %s2 = sld [smem:[#allocation0]]
  $region2: #{tpu_custom_call.1} parent=0
    _
  %s4 = ssub.s32 1, %s2
  %s5 = scalar_select 0, %s4, %s2
  %s7 = sshll.u32 1, 14
  %s8 = sxor.u32 4294967295, %s7
  %s11 = sshll.u32 3, 24
  %s12 = sxor.u32 4294967295, %s11
  %s13 = sand.u32 0, %s12
  %s15 = sor.u32 %s13, 0
  %18 = dma.general %s0, 256, %s1, [#allocation2], [#allocation3], [#allocation4], %s15, 0
  %s19 = smul.u32 8, 1
  %s20 = smul.u32 %s19, 2
  %s21 = sshll.u32 %s20, 4
  %22 = dma.done [#allocation2], %s21
  %23 = vsyncmov [#allocation2]
  %s24 = vpop.sfrf %23
  %p25 = scmp.eq.s32.totalorder %s24, 0
  %p26 = pneg %p25
  %28 = shalt.err (%p26)

</llo_original>
